<compile_context>
chip_gen: v5e
topology: v5e:2x2
jax: 0.10.0
libtpu: 0.0.40
codegen_flags: <defaults>
</compile_context>

<pallas_src>
import functools

import jax
import jax.numpy as jnp
from jax.experimental import pallas as pl
from jax.experimental.pallas import tpu as pltpu


def patch_embed_kernel(p_ref, w_ref, b_ref, o_ref):
    # p_ref: (tm, K)   w_ref: (K, tn)   b_ref: (1, tn)   o_ref: (tm, tn)
    acc = jnp.dot(p_ref[...], w_ref[...], preferred_element_type=jnp.float32)
    o_ref[...] = (acc + b_ref[...].astype(jnp.float32)).astype(o_ref.dtype)


def _pick_tile(n, cap, align):
    """Largest tile <= cap that divides n and is a multiple of `align`; n if n <= cap."""
    if n <= cap:
        return n
    t = (cap // align) * align
    while t >= align:
        if n % t == 0:
            return t
        t -= align
    return n


def _round_up(n, m):
    return ((n + m - 1) // m) * m


@functools.partial(jax.jit, static_argnames=("patch_size", "stride", "compute_dtype"))
def patch_embed(x, w, b, *, patch_size=4, stride=4, compute_dtype=None):
    """PatchEmbed forward.

    x : (B, C, H, W)  (NCHW, matching the PyTorch module)
    w : (E, C, p, p)  (OIHW, PyTorch Conv2d weight layout)
    b : (E,)
    compute_dtype : optional dtype (e.g. jnp.bfloat16) for streamed operands on v6e/v7x.
    returns (B, Hp*Wp, E)  ==  proj(x).flatten(2).transpose(1, 2)
    """
    # TODO(synk): only the default non-overlapping case (stride == patch_size) is
    # implemented; a general strided conv would need a different im2col.
    assert stride == patch_size, "patch_embed kernel assumes stride == patch_size"
    B, C, H, W = x.shape
    E = w.shape[0]
    p = patch_size
    assert H % p == 0 and W % p == 0
    Hp, Wp = H // p, W // p
    M = B * Hp * Wp
    K = C * p * p

    out_dtype = x.dtype
    cdtype = jnp.dtype(compute_dtype) if compute_dtype is not None else jnp.dtype(x.dtype)

    # im2col.  Patch feature order is (c, ph, pw), matching Conv2d's weight flattening.
    # Reshapes are free; the transpose is the only data movement and is a fusion
    # candidate for the pallas_call input (allow_input_fusion below).
    patches = (
        x.reshape(B, C, Hp, p, Wp, p)
         .transpose(0, 2, 4, 1, 3, 5)          # (B, Hp, Wp, C, p, p)
         .reshape(M, K)
    )
    wk = w.reshape(E, K).T                      # (K, E) — one-time parameter transform
    br = b.reshape(1, E).astype(jnp.float32)

    if cdtype != jnp.dtype(patches.dtype):
        patches = patches.astype(cdtype)
        wk = wk.astype(cdtype)

    # Alignment padding (only materializes when actually needed).
    Kp = _round_up(K, 8)        # K: LHS lane axis / RHS sublane axis
    Mp = _round_up(M, 8)        # sublane axis of LHS / output
    Ep = _round_up(E, 128)      # lane axis of RHS / output (unmasked stores)
    if Kp != K:
        patches = jnp.pad(patches, ((0, 0), (0, Kp - K)))
        wk = jnp.pad(wk, ((0, Kp - K), (0, 0)))
    if Mp != M:
        patches = jnp.pad(patches, ((0, Mp - M), (0, 0)))
    if Ep != E:
        wk = jnp.pad(wk, ((0, 0), (0, Ep - E)))
        br = jnp.pad(br, ((0, 0), (0, Ep - E)))

    in_item = jnp.dtype(cdtype).itemsize
    out_item = jnp.dtype(out_dtype).itemsize

    # Explicit VMEM tile budget so the same tiling fits v7x (64 MiB physical VMEM).
    VMEM_TILE_BUDGET = 24 * 1024 * 1024

    tn = _pick_tile(Ep, 1024, 128)              # embed lanes per step (multiple of 128)

    def tile_bytes(tm_, tn_):
        # double-buffered patches / weight / output tiles (+ bias, negligible)
        return 2 * (tm_ * Kp * in_item + Kp * tn_ * in_item
                    + tm_ * tn_ * out_item + tn_ * 4)

    tm_cap = 2048                               # per review: 1024-4096 >> 256
    while tm_cap > 8 and tile_bytes(tm_cap, tn) > VMEM_TILE_BUDGET:
        tm_cap //= 2
    tm = _pick_tile(Mp, tm_cap, 8)

    # v7x has 2 TensorCores: never collapse the grid to a single step when M allows two.
    if (Mp // tm) * (Ep // tn) == 1 and Mp >= 16 and (Mp // 2) % 8 == 0:
        tm = Mp // 2

    # Embed axis OUTER so the (Kp, tn) weight tile stays resident across the M sweep.
    grid = (Ep // tn, Mp // tm)

    vmem_limit = int(min(48 * 1024 * 1024,
                         max(32 * 1024 * 1024, tile_bytes(tm, tn) + 16 * 1024 * 1024)))

    out2d = pl.pallas_call(
        patch_embed_kernel,
        out_shape=jax.ShapeDtypeStruct((Mp, Ep), out_dtype),
        grid_spec=pltpu.PrefetchScalarGridSpec(
            num_scalar_prefetch=0,
            grid=grid,
            in_specs=[
                pl.BlockSpec((tm, Kp), lambda j, i: (i, 0)),   # patches: streamed
                pl.BlockSpec((Kp, tn), lambda j, i: (0, j)),   # weight: resident per j
                pl.BlockSpec((1, tn), lambda j, i: (0, j)),    # bias
            ],
            out_specs=pl.BlockSpec((tm, tn), lambda j, i: (i, j)),
        ),
        compiler_params=pltpu.CompilerParams(
            dimension_semantics=("parallel", "parallel"),
            vmem_limit_bytes=vmem_limit,
            # Let XLA fuse the im2col transpose into the patches operand (no separate
            # HBM round-trip for the activations).  Permission only; safe if declined.
            allow_input_fusion=[True, False, False],
        ),
    )(patches, wk, br)

    if Mp != M or Ep != E:
        out2d = out2d[:M, :E]
    return out2d.reshape(B, Hp * Wp, E)


# ---------------------------- pure-JAX reference ----------------------------
def patch_embed_ref(x, w, b, patch_size):
    dn = ('NCHW', 'OIHW', 'NCHW')
    y = jax.lax.conv_general_dilated(
        x, w, (patch_size, patch_size), 'VALID', dimension_numbers=dn)
    y = y + b.reshape(1, -1, 1, 1)
    B, E, Hp, Wp = y.shape
    return y.reshape(B, E, Hp * Wp).transpose(0, 2, 1)


if __name__ == "__main__":
    # Small shapes consistent with the module: batch=2, in_chans=4, spatial=16,
    # patch_size=stride=4, embed_dim=128 (kept lane-aligned; default 32**3 is huge).
    B, C, H, W = 2, 4, 16, 16
    p = 4
    E = 128

    key = jax.random.PRNGKey(0)
    k1, k2, k3 = jax.random.split(key, 3)
    fan_in = C * p * p
    w = jax.random.normal(k1, (E, C, p, p), jnp.float32) / jnp.sqrt(fan_in)
    b = 0.05 * jax.random.normal(k2, (E,), jnp.float32)
    x = jax.random.normal(k3, (B, C, H, W), jnp.float32)

    out = patch_embed(x, w, b, patch_size=p, stride=p)
    out = jax.block_until_ready(out)

    ref = patch_embed_ref(x, w, b, p)
    assert out.shape == ref.shape == (B, (H // p) * (W // p), E), (out.shape, ref.shape)
    assert out.dtype == ref.dtype
    assert jnp.allclose(out, ref, rtol=1e-4, atol=1e-4), (
        float(jnp.max(jnp.abs(out - ref))))

    print("KERNEL_OK")
</pallas_src>

<mosaic_0001>
module attributes {stable_mosaic.version = 11 : i64} {
  func.func @patch_embed_kernel(%arg0: i32, %arg1: i32, %arg2: memref<16x64xf32, #tpu.memory_space<vmem>>, %arg3: memref<64x128xf32, #tpu.memory_space<vmem>>, %arg4: memref<1x128xf32, #tpu.memory_space<vmem>>, %arg5: memref<16x128xf32, #tpu.memory_space<vmem>>) attributes {dimension_semantics = [#tpu.dimension_semantics<parallel>, #tpu.dimension_semantics<parallel>], iteration_bounds = array<i64: 1, 2>, scalar_prefetch = 0 : i64, scratch_operands = 0 : i64, tpu.core_type = #tpu.core_type<tc>, window_params = [{transform_indices = @transform_0, window_bounds = array<i64: 16, 64>}, {transform_indices = @transform_1, window_bounds = array<i64: 64, 128>}, {transform_indices = @transform_2, window_bounds = array<i64: 1, 128>}, {transform_indices = @transform_3, window_bounds = array<i64: 16, 128>}]} {
    %c0 = arith.constant 0 : index
    %c0_0 = arith.constant 0 : index
    %0 = vector.load %arg2[%c0, %c0_0] : memref<16x64xf32, #tpu.memory_space<vmem>>, vector<16x64xf32>
    %c0_1 = arith.constant 0 : index
    %c0_2 = arith.constant 0 : index
    %1 = vector.load %arg3[%c0_1, %c0_2] : memref<64x128xf32, #tpu.memory_space<vmem>>, vector<64x128xf32>
    %cst = arith.constant dense<0.000000e+00> : vector<16x128xf32>
    %2 = tpu.matmul %0, %1, %cst {dimension_numbers = #tpu.dot_dimension_numbers<[1], [0], [0], [1], [0, 0, 1, 1], [], []>} : vector<16x64xf32>, vector<64x128xf32>, vector<16x128xf32> -> vector<16x128xf32>
    %c0_3 = arith.constant 0 : index
    %c0_4 = arith.constant 0 : index
    %3 = vector.load %arg4[%c0_3, %c0_4] : memref<1x128xf32, #tpu.memory_space<vmem>>, vector<1x128xf32>
    %4 = vector.broadcast %3 : vector<1x128xf32> to vector<16x128xf32>
    %5 = arith.addf %2, %4 : vector<16x128xf32>
    %c0_5 = arith.constant 0 : index
    %c0_6 = arith.constant 0 : index
    %6 = vector.load %arg5[%c0_5, %c0_6] : memref<16x128xf32, #tpu.memory_space<vmem>>, vector<16x128xf32>
    tpu.vector_store %arg5[%c0_5, %c0_6], %5 {strides = array<i32>} : memref<16x128xf32, #tpu.memory_space<vmem>>, vector<16x128xf32>,
    return
  }
  func.func @transform_0(%arg0: i32, %arg1: i32) -> (i32, i32) {
    %c0_i32 = arith.constant 0 : i32
    %c0_i32_0 = arith.constant 0 : i32
    return %arg1, %c0_i32 : i32, i32
  }
  func.func @transform_1(%arg0: i32, %arg1: i32) -> (i32, i32) {
    %c0_i32 = arith.constant 0 : i32
    %c0_i32_0 = arith.constant 0 : i32
    return %c0_i32, %arg0 : i32, i32
  }
  func.func @transform_2(%arg0: i32, %arg1: i32) -> (i32, i32) {
    %c0_i32 = arith.constant 0 : i32
    %c0_i32_0 = arith.constant 0 : i32
    return %c0_i32, %arg0 : i32, i32
  }
  func.func @transform_3(%arg0: i32, %arg1: i32) -> (i32, i32) {
    %c0_i32 = arith.constant 0 : i32
    return %arg1, %arg0 : i32, i32
  }
}

</mosaic_0001>

<llo_original>
// kernel: patch_embed.1
$region0: #{patch_embed.1}
  #allocation0 [shape = 'u32[]', space=smem, size = 0x4, offset = 0x4, fixed_abs, tag = 'smem constant byte address 0x4 - core index']
  #allocation1 [shape = 'u32[72,128]{1,0:T(1,128)}', space=vmem, size = 0x9000, scoped, tag = 'internal scratch']
  %s0 = inlined_call_operand.vmem [shape: f32[32,64], index: 0, kind: input, shape index: {}]
  %s1 = inlined_call_operand.vmem [shape: f32[64,128], index: 1, kind: input, shape index: {}]
  %s2 = inlined_call_operand.vmem [shape: f32[1,128], index: 2, kind: input, shape index: {}]
  %s3 = inlined_call_operand.hbm [shape: f32[32,128], index: 3, kind: output, shape index: {}]
  %s4 = sld [smem:[#allocation0]]
  $region45: #{patch_embed.1} parent=0
    _
  %s6 = ssub.s32 1, %s4
  %s7 = scalar_select 0, %s6, %s4
  $region1: #{patch_embed.1} parent=0
    #allocation2 [shape = 'u8[16384]{0}', space=vmem, size = 0x4000, scoped, tag = 'output window, operand 0']
    #allocation3 [shape = 's32[2]{0}', space=sflag, size = 0x8, scoped, tag = 'scoped memory for patch_embed.1']
    %8 = vsyncpa [#allocation3], 0
    %s9 = scalar_lea.sflag [#allocation3], 1
    %10 = vsyncpa %s9, 0
    loop: start=0, step=1, limit=4
    $region2: #{patch_embed.1} parent=1 // loop_pre_header
      _
    $region3: #{patch_embed.1} parent=1 // loop_header
      %s12 = sphi 0, %s16
      %p13 = scmp.ge.s32.totalorder %s12, 4
      %s19 = sphi 0, %s31
      %s20 = sphi 0, %s27
      %s21 = sphi 0, %s19
      %s22 = sphi 0, %s20
      %s23 = sphi 0, %s21
      %s24 = sphi 0, %s22
      %s34 = sphi 0, %s36
      %s37 = sphi 0, %s34
      %s38 = sphi 0, %s37
      %s54 = sphi 0, %s38
      %s60 = sphi 0, %s62
      %s63 = sphi 0, %s60
      %s64 = sphi 0, %s63
      %s80 = sphi 0, %s64
      %s86 = sphi 0, %s88
      %s89 = sphi 0, %s86
      %s90 = sphi 0, %s89
      %s106 = sphi 0, %s90
      %s114 = sphi 0, %s116
      %s117 = sphi 0, %s114
      %s118 = sphi 0, %s117
      %s134 = sphi 0, %s118
    $region4: #{patch_embed.1} parent=1 // loop_header_branch
      %15 = sbr.rel (%p13) target = $region8
    $region5: #{patch_embed.1} parent=1 // loop_body
      %s17 = ssub.s32 %s12, 1
      %s18 = ssub.s32 %s12, 2
      %s25 = sadd.s32 1, %s20
      %p26 = scmp.ge.s32.totalorder %s25, 2
      %s27 = scalar_select %p26, 0, %s25
      %s28 = sadd.s32 1, %s19
      %s29 = scalar_select %p26, %s28, %s19
      %p30 = scmp.ge.s32.totalorder %s29, 1
      %s31 = scalar_select %p30, 0, %s29
      %s32 = ssub.s32 %s20, %s27
      %p33 = scmp.eq.s32.totalorder %s32, 0
      %s35 = sadd.s32 %s34, 1
      %s36 = scalar_select %p33, %s34, %s35
      %p39 = pneg %p33
      %p40 = scmp.eq.s32.totalorder %s12, 1
      %p41 = por %p39, %p40
      %p42 = scmp.ne.s32.totalorder %s34, %s37
      %p43 = scmp.eq.s32.totalorder %s12, 0
      %p44 = por %p42, %p43
      %p45 = scmp.ne.s32.totalorder %s34, %s37
      %p46 = scmp.eq.s32.totalorder %s17, 1
      %p47 = por %p45, %p46
      %p48 = scmp.ne.s32.totalorder %s37, %s38
      %p49 = scmp.eq.s32.totalorder %s17, 0
      %p50 = por %p48, %p49
      %p51 = scmp.ne.s32.totalorder %s37, %s38
      %p52 = scmp.eq.s32.totalorder %s18, 1
      %p53 = por %p51, %p52
      %p55 = scmp.ne.s32.totalorder %s38, %s54
      %p56 = scmp.eq.s32.totalorder %s18, 0
      %p57 = por %p55, %p56
      %s58 = ssub.s32 %s19, %s31
      %p59 = scmp.eq.s32.totalorder %s58, 0
      %s61 = sadd.s32 %s60, 1
      %s62 = scalar_select %p59, %s60, %s61
      %p65 = pneg %p59
      %p66 = scmp.eq.s32.totalorder %s12, 1
      %p67 = por %p65, %p66
      %p68 = scmp.ne.s32.totalorder %s60, %s63
      %p69 = scmp.eq.s32.totalorder %s12, 0
      %p70 = por %p68, %p69
      %p71 = scmp.ne.s32.totalorder %s60, %s63
      %p72 = scmp.eq.s32.totalorder %s17, 1
      %p73 = por %p71, %p72
      %p74 = scmp.ne.s32.totalorder %s63, %s64
      %p75 = scmp.eq.s32.totalorder %s17, 0
      %p76 = por %p74, %p75
      %p77 = scmp.ne.s32.totalorder %s63, %s64
      %p78 = scmp.eq.s32.totalorder %s18, 1
      %p79 = por %p77, %p78
      %p81 = scmp.ne.s32.totalorder %s64, %s80
      %p82 = scmp.eq.s32.totalorder %s18, 0
      %p83 = por %p81, %p82
      %s84 = ssub.s32 %s19, %s31
      %p85 = scmp.eq.s32.totalorder %s84, 0
      %s87 = sadd.s32 %s86, 1
      %s88 = scalar_select %p85, %s86, %s87
      %p91 = pneg %p85
      %p92 = scmp.eq.s32.totalorder %s12, 1
      %p93 = por %p91, %p92
      %p94 = scmp.ne.s32.totalorder %s86, %s89
      %p95 = scmp.eq.s32.totalorder %s12, 0
      %p96 = por %p94, %p95
      %p97 = scmp.ne.s32.totalorder %s86, %s89
      %p98 = scmp.eq.s32.totalorder %s17, 1
      %p99 = por %p97, %p98
      %p100 = scmp.ne.s32.totalorder %s89, %s90
      %p101 = scmp.eq.s32.totalorder %s17, 0
      %p102 = por %p100, %p101
      %p103 = scmp.ne.s32.totalorder %s89, %s90
      %p104 = scmp.eq.s32.totalorder %s18, 1
      %p105 = por %p103, %p104
      %p107 = scmp.ne.s32.totalorder %s90, %s106
      %p108 = scmp.eq.s32.totalorder %s18, 0
      %p109 = por %p107, %p108
      %s110 = ssub.s32 %s20, %s27
      %s111 = ssub.s32 %s19, %s31
      %s112 = sor.u32 %s110, %s111
      %p113 = scmp.eq.s32.totalorder %s112, 0
      %s115 = sadd.s32 %s114, 1
      %s116 = scalar_select %p113, %s114, %s115
      %p119 = pneg %p113
      %p120 = scmp.eq.s32.totalorder %s12, 1
      %p121 = por %p119, %p120
      %p122 = scmp.ne.s32.totalorder %s114, %s117
      %p123 = scmp.eq.s32.totalorder %s12, 0
      %p124 = por %p122, %p123
      %p125 = scmp.ne.s32.totalorder %s114, %s117
      %p126 = scmp.eq.s32.totalorder %s17, 1
      %p127 = por %p125, %p126
      %p128 = scmp.ne.s32.totalorder %s117, %s118
      %p129 = scmp.eq.s32.totalorder %s17, 0
      %p130 = por %p128, %p129
      %p131 = scmp.ne.s32.totalorder %s117, %s118
      %p132 = scmp.eq.s32.totalorder %s18, 1
      %p133 = por %p131, %p132
      %p135 = scmp.ne.s32.totalorder %s118, %s134
      %p136 = scmp.eq.s32.totalorder %s18, 0
      %p137 = por %p135, %p136
      %p138 = scmp.le.s32.totalorder 1, %s12
      %p139 = scmp.lt.s32.totalorder %s12, 3
      %p140 = pnand %p138, %p139
      %p141 = pneg %p140
      // Predicated region
      $region9: #{patch_embed.1} parent=5 // pred_check
        _
      $region10: #{patch_embed.1} parent=5 // pred_check_branch
        %143 = sbr.rel (%p140) target = $region12
      $region11: #{patch_embed.1} parent=5 // pred_region
        %s144 = ssub.s32 %s12, 1
        // Predicated region
        $region13: #{patch_embed.1} parent=11 // pred_check
          %p145 = pneg %p76
        $region14: #{patch_embed.1} parent=11 // pred_check_branch
          %147 = sbr.rel (%p145) target = $region16
        $region15: #{patch_embed.1} parent=11 // pred_region
          %p148 = scmp.lt.s32.totalorder %s21, 0
          %s149 = scalar_select %p148, %s21, 0
          %s150 = smul.addr %s149, 8
          %s151 = scalar_lea.vmem %s1, %s150
        $region16: #{patch_embed.1} parent=11 // pred_fallthru
          _
        // Predicated region
        $region17: #{patch_embed.1} parent=11 // pred_check
          %p152 = pneg %p102
        $region18: #{patch_embed.1} parent=11 // pred_check_branch
          %154 = sbr.rel (%p152) target = $region20
        $region19: #{patch_embed.1} parent=11 // pred_region
          %p155 = scmp.lt.s32.totalorder %s21, 0
          %s156 = scalar_select %p155, %s21, 0
          %s157 = scalar_lea.vmem %s2, %s156
        $region20: #{patch_embed.1} parent=11 // pred_fallthru
          _
      $region12: #{patch_embed.1} parent=5 // pred_fallthru
        _
      %p158 = scmp.lt.s32.totalorder %s12, 2
      // Predicated region
      $region21: #{patch_embed.1} parent=5 // pred_check
        %p159 = pneg %p158
      $region22: #{patch_embed.1} parent=5 // pred_check_branch
        %161 = sbr.rel (%p159) target = $region24
      $region23: #{patch_embed.1} parent=5 // pred_region
        // Predicated region
        $region25: #{patch_embed.1} parent=23 // pred_check
          %p162 = pneg %p44
        $region26: #{patch_embed.1} parent=23 // pred_check_branch
          %164 = sbr.rel (%p162) target = $region28
        $region27: #{patch_embed.1} parent=23 // pred_region
          %s165 = smul.u32 2, %s20
          %p166 = scmp.lt.s32.totalorder %s165, 3
          %s167 = scalar_select %p166, %s165, 3
          %s168 = smul.addr %s167, 8
          %s169 = scalar_lea.vmem %s0, %s168
          %s170 = smul.u32 2, %s20
        $region28: #{patch_embed.1} parent=23 // pred_fallthru
          _
      $region24: #{patch_embed.1} parent=5 // pred_fallthru
        _
      %p171 = scmp.le.s32.totalorder 1, %s12
      %p172 = scmp.lt.s32.totalorder %s12, 3
      %p173 = pnand %p171, %p172
      %p174 = pneg %p173
      // Predicated region
      $region29: #{patch_embed.1} parent=5 // pred_check
        _
      $region30: #{patch_embed.1} parent=5 // pred_check_branch
        %176 = sbr.rel (%p173) target = $region32
      $region31: #{patch_embed.1} parent=5 // pred_region
        %s177 = ssub.s32 %s12, 1
        %s178 = smul.u32 2, %s22
        %p179 = scmp.lt.s32.totalorder %s178, 3
        %s180 = scalar_select %p179, %s178, 3
        %s181 = smul.addr %s180, 8
        %s182 = scalar_lea.vmem %s0, %s181
        %p183 = pneg %p50
        %p184 = pneg %p47
        %p185 = scmp.lt.s32.totalorder %s21, 0
        %s186 = scalar_select %p185, %s21, 0
        %s187 = smul.addr %s186, 8
        %s188 = scalar_lea.vmem %s1, %s187
        %p189 = pneg %p76
        %p190 = pneg %p73
        %p191 = scmp.lt.s32.totalorder %s21, 0
        %s192 = scalar_select %p191, %s21, 0
        %s193 = scalar_lea.vmem %s2, %s192
        %p194 = pneg %p102
        %p195 = pneg %p99
        %p196 = pneg %p130
        %p197 = pneg %p127
        %s198 = sand.u32 %s117, 1
        %s199 = scalar_lea.sflag [#allocation3], %s198
        %s200 = sand.u32 %s117, 1
        %s201 = smul.addr %s200, 16
        %s202 = scalar_lea.vmem [#allocation2], %s201
        %s203 = smul.u32 2, %s22
        %p204 = scmp.lt.s32.totalorder %s203, 3
        %s205 = scalar_select %p204, %s203, 3
        %s206 = smul.addr %s205, 8
        %s207 = scalar_lea.vmem %s0, %s206
        %s208 = smul.u32 2, %s22
        %p209 = scmp.lt.s32.totalorder %s21, 0
        %s210 = scalar_select %p209, %s21, 0
        %s211 = smul.addr %s210, 8
        %s212 = scalar_lea.vmem %s1, %s211
        %p213 = scmp.lt.s32.totalorder %s21, 0
        %s214 = scalar_select %p213, %s21, 0
        %s215 = scalar_lea.vmem %s2, %s214
        %s216 = smul.u32 2, %s22
        %v217 = vld [vmem:[%s207] sm:$0xff]
        %v218 = vld [vmem:[%s207 + $0x8] sm:$0xff]
        %v219 = vld [vmem:[%s212] sm:$0xff]
        %v220 = vld [vmem:[%s212 + $0x8] sm:$0xff]
        %v221 = vld [vmem:[%s212 + $0x10] sm:$0xff]
        %v222 = vld [vmem:[%s212 + $0x18] sm:$0xff]
        %v223 = vld [vmem:[%s212 + $0x20] sm:$0xff]
        %v224 = vld [vmem:[%s212 + $0x28] sm:$0xff]
        %v225 = vld [vmem:[%s212 + $0x30] sm:$0xff]
        %v226 = vld [vmem:[%s212 + $0x38] sm:$0xff]
        %v227 = vld [vmem:[%s215] sm:$0x1]
        %v229 = vperm.slane %v227, 0
        %vm231 = vcmask 523264
        %v233 = vsel %vm231, %v217, 0
        %v236 = vsel %vm231, %v218, 0
        %238 = vmatpush.msra.mxu0 0.0
        %239 = vmatpush.msra.mxu0 0.0
        %240 = vmatpush.msra.mxu0 0.0
        %241 = vmatpush.msra.mxu0 0.0
        %242 = vmatpush.msra.mxu0 0.0
        %243 = vmatpush.msra.mxu0 0.0
        %244 = vmatpush.msra.mxu0 0.0
        %245 = vmatpush.msra.mxu0 0.0
        %246 = vmatpush.msra.mxu0 %v226
        %247 = vmatpush.msra.mxu0 %v225
        %248 = vmatpush.msra.mxu0 %v224
        %249 = vmatpush.msra.mxu0 %v223
        %250 = vmatpush.msra.mxu0 %v222
        %251 = vmatpush.msra.mxu0 %v221
        %252 = vmatpush.msra.mxu0 %v220
        %253 = vmatpush.msra.mxu0 %v219
        %254 = vmatmul.f32.gmra.mxu0 %v233
        %v255 = vpop.f32.mrf.mxu0
        %v256 = vadd.f32 %v229, %v255
        %257 = vmatmul.f32.gmra.mxu0 %v236
        %v258 = vpop.f32.mrf.mxu0
        %v259 = vadd.f32 %v229, %v258
        %260 = vdwg.mxu0
        %261 = vst [vmem:[%s202] sm:$0xff] %v256
        %262 = vst [vmem:[%s202 + $0x8] sm:$0xff] %v259
        %s263 = sand.u32 %s117, 1
        %s264 = scalar_lea.sflag [#allocation3], %s263
        %s265 = sand.u32 %s117, 1
        %s266 = smul.addr %s265, 16
        %s267 = scalar_lea.vmem [#allocation2], %s266
        // Predicated region
        $region33: #{patch_embed.1} parent=31 // pred_check
          %p268 = pneg %p127
        $region34: #{patch_embed.1} parent=31 // pred_check_branch
          %270 = sbr.rel (%p268) target = $region36
        $region35: #{patch_embed.1} parent=31 // pred_region
          %s271 = smul.u32 2, %s22
          %273 = vsyncadd %s264, 0
          %s274 = sadd.s32 %s21, %s271
          %s275 = smul.addr %s274, 8
          %s276 = scalar_lea.hbm %s3, %s275
          %s277 = sshll.u32 %s267, 4
          %s278 = int_to_ptr.vmem [resolvable:$true] %s277
          %s279 = sshll.u32 %s276, 4
          %s280 = int_to_ptr.hbm [resolvable:$true] %s279
          %285 = dma.vmem_to_hbm [thread:$0]  %s278, 256, %s280, %s264, 128, 128, 8
        $region36: #{patch_embed.1} parent=31 // pred_fallthru
          _
      $region32: #{patch_embed.1} parent=5 // pred_fallthru
        _
      %p286 = scmp.le.s32.totalorder 2, %s12
      // Predicated region
      $region37: #{patch_embed.1} parent=5 // pred_check
        %p287 = pneg %p286
      $region38: #{patch_embed.1} parent=5 // pred_check_branch
        %289 = sbr.rel (%p287) target = $region40
      $region39: #{patch_embed.1} parent=5 // pred_region
        %s290 = ssub.s32 %s12, 2
        // Predicated region
        $region41: #{patch_embed.1} parent=39 // pred_check
          %p291 = pneg %p133
        $region42: #{patch_embed.1} parent=39 // pred_check_branch
          %293 = sbr.rel (%p291) target = $region44
        $region43: #{patch_embed.1} parent=39 // pred_region
          %s294 = sand.u32 %s118, 1
          %s295 = scalar_lea.sflag [#allocation3], %s294
          %s296 = sand.u32 %s118, 1
          %s297 = smul.addr %s296, 16
          %s298 = scalar_lea.vmem [#allocation2], %s297
          %300 = dma.done %s295, 256
        $region44: #{patch_embed.1} parent=39 // pred_fallthru
          _
      $region40: #{patch_embed.1} parent=5 // pred_fallthru
        _
    $region6: #{patch_embed.1} parent=1 // loop_footer
      %s16 = sadd.s32 1, %s12
    $region7: #{patch_embed.1} parent=1 // loop_footer_branch
      %11 = sbr.rel target = $region3
    $region8: #{patch_embed.1} parent=1 // loop_exit
      _
    %301 = vsyncpa [#allocation3], 1
    %s302 = scalar_lea.sflag [#allocation3], 1
    %303 = vsyncpa %s302, 1

</llo_original>
